<compile_context>
chip_gen: v5e
topology: v5e:2x2
jax: 0.10.0
libtpu: 0.0.40
codegen_flags: <defaults>
</compile_context>

<pallas_src>
import functools

import jax
import jax.numpy as jnp
from jax.experimental import pallas as pl
from jax.experimental.pallas import tpu as pltpu

BN_EPS = 1e-5
LANE = 128
_VMEM_BUDGET = 24 * 1024 * 1024  # stay under the 32 MiB scoped default (v6e/v7x)


def _round_up(x, m):
    return (x + m - 1) // m * m


def _kernel_a_vmem(tile_n, d_in, d_bn):
    # double-buffered f32 x tile + bf16 h tile; resident bf16 W1 (count 2 bufs
    # conservatively); per-tile f32 stats block.
    return (2 * (tile_n * d_in * 4 + tile_n * d_bn * 2)
            + 2 * d_in * d_bn * 2 + 2 * 2 * d_bn * 4)


def _kernel_b_vmem(tile_n, d_bn, c_pad):
    # double-buffered bf16 h tile + (<=f32) y tile; resident bf16 W2 + small f32 vectors.
    return (2 * (tile_n * d_bn * 2 + tile_n * c_pad * 4)
            + 2 * d_bn * c_pad * 2 + 4 * 2 * d_bn * 4 + 2 * c_pad * 4)


def _pick_tile_n(n, requested, d_in, d_bn, c_pad):
    """Largest batch tile that divides N, is a multiple of 16 (bf16 sublane tile
    for the h output) and fits the scoped-VMEM budget.  Falls back to a single
    full-batch tile (always shape-legal)."""
    def fits(t):
        return max(_kernel_a_vmem(t, d_in, d_bn),
                   _kernel_b_vmem(t, d_bn, c_pad)) <= _VMEM_BUDGET

    if n <= requested and fits(n):
        return n  # whole batch in one tile: no per-step grid overhead
    best = None
    for t in range(16, min(requested, n) + 1, 16):
        if n % t == 0 and fits(t):
            best = t
    return best if best is not None else n


# ---------------------------------------------------------------------------
# Kernel A: Linear-1 (bf16 MXU, f32 accumulate) + per-tile batch statistics
# ---------------------------------------------------------------------------
def linear1_stats_kernel(x_ref, w1_ref, h_ref, stats_ref):
    # f32 -> bf16 cast done in-kernel so x makes only one HBM pass.
    x_bf = x_ref[...].astype(jnp.bfloat16)
    # [tile_n, D_in](bf16) @ [D_in, D_bn](bf16) -> f32 on the MXU.
    # b1 intentionally omitted: a constant bias cancels exactly in
    # training-mode BatchNorm centering (and is init'd to 0 anyway).
    h = jnp.dot(x_bf, w1_ref[...], preferred_element_type=jnp.float32)
    h_ref[...] = h.astype(h_ref.dtype)

    # Per-tile partial sum / sum-of-squares in f32, written with ONE combined
    # store to this tile's own [1, 2, D_bn] slab (reduced in the wrapper).
    col_sum = jnp.sum(h, axis=0, keepdims=True)        # [1, D_bn]
    col_sumsq = jnp.sum(h * h, axis=0, keepdims=True)  # [1, D_bn]
    stats_ref[...] = jnp.concatenate(
        [col_sum, col_sumsq], axis=0).reshape(stats_ref.shape)


# ---------------------------------------------------------------------------
# Kernel B: BN affine (f32, VPU) + classifier matmul (bf16 MXU), padded output
# ---------------------------------------------------------------------------
def classifier_kernel(h_ref, scale_ref, shift_ref, w2_ref, b2_ref, y_ref):
    h_bn = h_ref[...].astype(jnp.float32) * scale_ref[...] + shift_ref[...]
    y = jnp.dot(h_bn.astype(jnp.bfloat16), w2_ref[...],
                preferred_element_type=jnp.float32)
    y_ref[...] = (y + b2_ref[...]).astype(y_ref.dtype)


@functools.partial(jax.jit, static_argnames=("class_num", "tile_n", "out_dtype"))
def class_block_forward(x, w1_bf, gamma, beta, w2_pad_bf, b2_pad, *,
                        class_num, tile_n=256, out_dtype=jnp.float32):
    """x: [N, D_in] f32; w1_bf: [D_in, D_bn] bf16; gamma/beta: [1, D_bn] f32;
    w2_pad_bf: [D_bn, C_pad] bf16 (class dim pre-padded to a multiple of 128);
    b2_pad: [1, C_pad] f32."""
    n, d_in = x.shape
    d_bn = w1_bf.shape[1]
    c_pad = w2_pad_bf.shape[1]
    tn = _pick_tile_n(n, tile_n, d_in, d_bn, c_pad)
    assert n % tn == 0
    num_tiles = n // tn

    # ---- Phase A: Linear1 + per-tile batch sums / sums-of-squares ----------
    h_bf, stats_partial = pl.pallas_call(
        linear1_stats_kernel,
        out_shape=(jax.ShapeDtypeStruct((n, d_bn), jnp.bfloat16),
                   jax.ShapeDtypeStruct((num_tiles, 2, d_bn), jnp.float32)),
        grid=(num_tiles,),
        in_specs=[pl.BlockSpec((tn, d_in), lambda i: (i, 0)),      # batch tile of x (f32)
                  pl.BlockSpec((d_in, d_bn), lambda i: (0, 0))],   # W1 resident (bf16)
        out_specs=(pl.BlockSpec((tn, d_bn), lambda i: (i, 0)),     # h tile (bf16)
                   pl.BlockSpec((1, 2, d_bn), lambda i: (i, 0, 0))),  # per-tile stats
        compiler_params=pltpu.CompilerParams(
            dimension_semantics=("parallel",)),  # no accumulator -> megacore OK
    )(x, w1_bf)

    # ---- Tiny f32 glue: stats -> per-feature BN scale/shift -----------------
    stats = jnp.sum(stats_partial, axis=0)                   # [2, D_bn]
    mean = stats[0:1] / n
    var = jnp.maximum(stats[1:2] / n - mean * mean, 0.0)     # biased batch variance
    scale = jax.lax.rsqrt(var + BN_EPS) * gamma              # [1, D_bn]
    shift = beta - mean * scale                              # [1, D_bn]

    # ---- Phase B: BN-apply + classifier matmul ------------------------------
    y_pad = pl.pallas_call(
        classifier_kernel,
        out_shape=jax.ShapeDtypeStruct((n, c_pad), out_dtype),
        grid=(num_tiles,),
        in_specs=[pl.BlockSpec((tn, d_bn), lambda i: (i, 0)),   # h tile
                  pl.BlockSpec((1, d_bn), lambda i: (0, 0)),    # scale resident
                  pl.BlockSpec((1, d_bn), lambda i: (0, 0)),    # shift resident
                  pl.BlockSpec((d_bn, c_pad), lambda i: (0, 0)),  # W2 resident (bf16)
                  pl.BlockSpec((1, c_pad), lambda i: (0, 0))],  # b2 resident
        out_specs=pl.BlockSpec((tn, c_pad), lambda i: (i, 0)),
        compiler_params=pltpu.CompilerParams(
            dimension_semantics=("parallel",)),  # shard batch tiles across TCs
    )(h_bf, scale, shift, w2_pad_bf, b2_pad)

    if class_num == c_pad:
        return y_pad
    return y_pad[:, :class_num]


# ---------------------------------------------------------------------------
# Parameter init matching the PyTorch module's initializers + one-time layout prep
# ---------------------------------------------------------------------------
def init_params(key, input_dim, num_bottleneck, class_num):
    k1, k2, k3 = jax.random.split(key, 3)
    # nn.Linear(input_dim, num_bottleneck): kaiming_normal_(mode='fan_out'), bias=0
    w1 = jax.random.normal(k1, (num_bottleneck, input_dim), jnp.float32) * \
        jnp.sqrt(2.0 / num_bottleneck)
    b1 = jnp.zeros((1, num_bottleneck), jnp.float32)
    # BatchNorm1d: gamma ~ N(1.0, 0.02), beta = 0
    gamma = 1.0 + 0.02 * jax.random.normal(k2, (1, num_bottleneck), jnp.float32)
    beta = jnp.zeros((1, num_bottleneck), jnp.float32)
    # classifier nn.Linear: normal_(std=0.001), bias = 0
    w2 = 0.001 * jax.random.normal(k3, (class_num, num_bottleneck), jnp.float32)
    b2 = jnp.zeros((1, class_num), jnp.float32)
    # [in, out] layouts for row-major MXU matmuls
    return dict(w1_t=w1.T, b1=b1, gamma=gamma, beta=beta, w2_t=w2.T, b2=b2)


def prepare_params(p):
    """One-time conversion to kernel layouts: bf16 W1, lane-padded bf16 W2, padded b2."""
    d_in, d_bn = p["w1_t"].shape
    c = p["w2_t"].shape[1]
    c_pad = _round_up(c, LANE)
    w1_bf = p["w1_t"].astype(jnp.bfloat16)
    w2_pad_bf = jnp.zeros((d_bn, c_pad), jnp.bfloat16).at[:, :c].set(
        p["w2_t"].astype(jnp.bfloat16))
    b2_pad = jnp.zeros((1, c_pad), jnp.float32).at[:, :c].set(p["b2"])
    return dict(w1_bf=w1_bf, gamma=p["gamma"], beta=p["beta"],
                w2_pad_bf=w2_pad_bf, b2_pad=b2_pad)


def reference_forward(x, w1_t, b1, gamma, beta, w2_t, b2):
    """Pure-f32 reference matching the PyTorch module (training-mode BN)."""
    h = x @ w1_t + b1
    mean = jnp.mean(h, axis=0, keepdims=True)
    var = jnp.mean((h - mean) ** 2, axis=0, keepdims=True)
    h_bn = (h - mean) / jnp.sqrt(var + BN_EPS) * gamma + beta
    return h_bn @ w2_t + b2


if __name__ == "__main__":
    # Small, (8,128)-aligned shapes: batch=64 (4 tiles of 16), D_in=D_bn=128, 20 classes.
    batch, input_dim, num_bottleneck, class_num = 64, 128, 128, 20

    key = jax.random.PRNGKey(0)
    kx, kp = jax.random.split(key)
    x = jax.random.normal(kx, (batch, input_dim), jnp.float32)
    p = init_params(kp, input_dim, num_bottleneck, class_num)
    kparams = prepare_params(p)

    # tile_n=16 exercises multiple grid steps + the partial-stats reduction.
    out = class_block_forward(x, kparams["w1_bf"], kparams["gamma"], kparams["beta"],
                              kparams["w2_pad_bf"], kparams["b2_pad"],
                              class_num=class_num, tile_n=16)
    out = jax.block_until_ready(out)

    ref = reference_forward(x, p["w1_t"], p["b1"], p["gamma"], p["beta"],
                            p["w2_t"], p["b2"])
    assert out.shape == (batch, class_num)
    max_err = float(jnp.max(jnp.abs(out - ref)))
    # bf16 matmul operands -> allow small tolerance vs the f32 reference.
    assert jnp.allclose(out, ref, atol=3e-3, rtol=3e-2), f"mismatch vs reference: {max_err}"

    print("KERNEL_OK")
</pallas_src>

<mosaic_0001>
module attributes {stable_mosaic.version = 11 : i64} {
  func.func @classifier_kernel(%arg0: i32, %arg1: memref<16x128xbf16, #tpu.memory_space<vmem>>, %arg2: memref<1x128xf32, #tpu.memory_space<vmem>>, %arg3: memref<1x128xf32, #tpu.memory_space<vmem>>, %arg4: memref<128x128xbf16, #tpu.memory_space<vmem>>, %arg5: memref<1x128xf32, #tpu.memory_space<vmem>>, %arg6: memref<16x128xf32, #tpu.memory_space<vmem>>) attributes {dimension_semantics = [#tpu.dimension_semantics<parallel>], iteration_bounds = array<i64: 4>, scalar_prefetch = 0 : i64, scratch_operands = 0 : i64, tpu.core_type = #tpu.core_type<tc>, window_params = [{transform_indices = @transform_0, window_bounds = array<i64: 16, 128>}, {pipeline_mode = #tpu.pipeline_mode<synchronous>, transform_indices = @transform_1, window_bounds = array<i64: 1, 128>}, {pipeline_mode = #tpu.pipeline_mode<synchronous>, transform_indices = @transform_2, window_bounds = array<i64: 1, 128>}, {pipeline_mode = #tpu.pipeline_mode<synchronous>, transform_indices = @transform_3, window_bounds = array<i64: 128, 128>}, {pipeline_mode = #tpu.pipeline_mode<synchronous>, transform_indices = @transform_4, window_bounds = array<i64: 1, 128>}, {transform_indices = @transform_5, window_bounds = array<i64: 16, 128>}]} {
    %c0 = arith.constant 0 : index
    %c0_0 = arith.constant 0 : index
    %0 = vector.load %arg1[%c0, %c0_0] : memref<16x128xbf16, #tpu.memory_space<vmem>>, vector<16x128xbf16>
    %1 = arith.extf %0 : vector<16x128xbf16> to vector<16x128xf32>
    %c0_1 = arith.constant 0 : index
    %c0_2 = arith.constant 0 : index
    %2 = vector.load %arg2[%c0_1, %c0_2] : memref<1x128xf32, #tpu.memory_space<vmem>>, vector<1x128xf32>
    %3 = vector.broadcast %2 : vector<1x128xf32> to vector<16x128xf32>
    %4 = arith.mulf %1, %3 : vector<16x128xf32>
    %c0_3 = arith.constant 0 : index
    %c0_4 = arith.constant 0 : index
    %5 = vector.load %arg3[%c0_3, %c0_4] : memref<1x128xf32, #tpu.memory_space<vmem>>, vector<1x128xf32>
    %6 = vector.broadcast %5 : vector<1x128xf32> to vector<16x128xf32>
    %7 = arith.addf %4, %6 : vector<16x128xf32>
    %8 = arith.truncf %7 : vector<16x128xf32> to vector<16x128xbf16>
    %c0_5 = arith.constant 0 : index
    %c0_6 = arith.constant 0 : index
    %9 = vector.load %arg4[%c0_5, %c0_6] : memref<128x128xbf16, #tpu.memory_space<vmem>>, vector<128x128xbf16>
    %cst = arith.constant dense<0.000000e+00> : vector<16x128xf32>
    %10 = tpu.matmul %8, %9, %cst {dimension_numbers = #tpu.dot_dimension_numbers<[1], [0], [0], [1], [0, 0, 1, 1], [], []>} : vector<16x128xbf16>, vector<128x128xbf16>, vector<16x128xf32> -> vector<16x128xf32>
    %c0_7 = arith.constant 0 : index
    %c0_8 = arith.constant 0 : index
    %11 = vector.load %arg5[%c0_7, %c0_8] : memref<1x128xf32, #tpu.memory_space<vmem>>, vector<1x128xf32>
    %12 = vector.broadcast %11 : vector<1x128xf32> to vector<16x128xf32>
    %13 = arith.addf %10, %12 : vector<16x128xf32>
    %c0_9 = arith.constant 0 : index
    %c0_10 = arith.constant 0 : index
    %14 = vector.load %arg6[%c0_9, %c0_10] : memref<16x128xf32, #tpu.memory_space<vmem>>, vector<16x128xf32>
    tpu.vector_store %arg6[%c0_9, %c0_10], %13 {strides = array<i32>} : memref<16x128xf32, #tpu.memory_space<vmem>>, vector<16x128xf32>,
    return
  }
  func.func @transform_0(%arg0: i32) -> (i32, i32) {
    %c0_i32 = arith.constant 0 : i32
    %c0_i32_0 = arith.constant 0 : i32
    return %arg0, %c0_i32 : i32, i32
  }
  func.func @transform_1(%arg0: i32) -> (i32, i32) {
    %c0_i32 = arith.constant 0 : i32
    %c0_i32_0 = arith.constant 0 : i32
    %c0_i32_1 = arith.constant 0 : i32
    return %c0_i32, %c0_i32_0 : i32, i32
  }
  func.func @transform_2(%arg0: i32) -> (i32, i32) {
    %c0_i32 = arith.constant 0 : i32
    %c0_i32_0 = arith.constant 0 : i32
    %c0_i32_1 = arith.constant 0 : i32
    return %c0_i32, %c0_i32_0 : i32, i32
  }
  func.func @transform_3(%arg0: i32) -> (i32, i32) {
    %c0_i32 = arith.constant 0 : i32
    %c0_i32_0 = arith.constant 0 : i32
    %c0_i32_1 = arith.constant 0 : i32
    return %c0_i32, %c0_i32_0 : i32, i32
  }
  func.func @transform_4(%arg0: i32) -> (i32, i32) {
    %c0_i32 = arith.constant 0 : i32
    %c0_i32_0 = arith.constant 0 : i32
    %c0_i32_1 = arith.constant 0 : i32
    return %c0_i32, %c0_i32_0 : i32, i32
  }
  func.func @transform_5(%arg0: i32) -> (i32, i32) {
    %c0_i32 = arith.constant 0 : i32
    %c0_i32_0 = arith.constant 0 : i32
    return %arg0, %c0_i32 : i32, i32
  }
}

module attributes {stable_mosaic.version = 11 : i64} {
  func.func @linear1_stats_kernel(%arg0: i32, %arg1: memref<16x128xf32, #tpu.memory_space<vmem>>, %arg2: memref<128x128xbf16, #tpu.memory_space<vmem>>, %arg3: memref<16x128xbf16, #tpu.memory_space<vmem>>, %arg4: memref<1x2x128xf32, #tpu.memory_space<vmem>>) attributes {dimension_semantics = [#tpu.dimension_semantics<parallel>], iteration_bounds = array<i64: 4>, scalar_prefetch = 0 : i64, scratch_operands = 0 : i64, tpu.core_type = #tpu.core_type<tc>, window_params = [{transform_indices = @transform_0, window_bounds = array<i64: 16, 128>}, {pipeline_mode = #tpu.pipeline_mode<synchronous>, transform_indices = @transform_1, window_bounds = array<i64: 128, 128>}, {transform_indices = @transform_2, window_bounds = array<i64: 16, 128>}, {transform_indices = @transform_3, window_bounds = array<i64: 1, 2, 128>}]} {
    %c0 = arith.constant 0 : index
    %c0_0 = arith.constant 0 : index
    %0 = vector.load %arg1[%c0, %c0_0] : memref<16x128xf32, #tpu.memory_space<vmem>>, vector<16x128xf32>
    %1 = arith.truncf %0 : vector<16x128xf32> to vector<16x128xbf16>
    %c0_1 = arith.constant 0 : index
    %c0_2 = arith.constant 0 : index
    %2 = vector.load %arg2[%c0_1, %c0_2] : memref<128x128xbf16, #tpu.memory_space<vmem>>, vector<128x128xbf16>
    %cst = arith.constant dense<0.000000e+00> : vector<16x128xf32>
    %3 = tpu.matmul %1, %2, %cst {dimension_numbers = #tpu.dot_dimension_numbers<[1], [0], [0], [1], [0, 0, 1, 1], [], []>} : vector<16x128xbf16>, vector<128x128xbf16>, vector<16x128xf32> -> vector<16x128xf32>
    %4 = arith.truncf %3 : vector<16x128xf32> to vector<16x128xbf16>
    %c0_3 = arith.constant 0 : index
    %c0_4 = arith.constant 0 : index
    %5 = vector.load %arg3[%c0_3, %c0_4] : memref<16x128xbf16, #tpu.memory_space<vmem>>, vector<16x128xbf16>
    tpu.vector_store %arg3[%c0_3, %c0_4], %4 {strides = array<i32>} : memref<16x128xbf16, #tpu.memory_space<vmem>>, vector<16x128xbf16>,
    %cst_5 = arith.constant dense<0.000000e+00> : vector<128xf32>
    %6 = vector.multi_reduction <add>, %3, %cst_5 [0] : vector<16x128xf32> to vector<128xf32>
    %7 = vector.shape_cast %6 : vector<128xf32> to vector<1x128xf32>
    %8 = arith.mulf %3, %3 : vector<16x128xf32>
    %cst_6 = arith.constant dense<0.000000e+00> : vector<128xf32>
    %9 = vector.multi_reduction <add>, %8, %cst_6 [0] : vector<16x128xf32> to vector<128xf32>
    %10 = vector.shape_cast %9 : vector<128xf32> to vector<1x128xf32>
    %11 = tpu.concatenate %7, %10 in 0 : vector<1x128xf32>, vector<1x128xf32> -> vector<2x128xf32>
    %12 = vector.shape_cast %11 : vector<2x128xf32> to vector<1x2x128xf32>
    %c0_7 = arith.constant 0 : index
    %c0_8 = arith.constant 0 : index
    %c0_9 = arith.constant 0 : index
    %13 = vector.load %arg4[%c0_7, %c0_8, %c0_9] : memref<1x2x128xf32, #tpu.memory_space<vmem>>, vector<1x2x128xf32>
    tpu.vector_store %arg4[%c0_7, %c0_8, %c0_9], %12 {strides = array<i32>} : memref<1x2x128xf32, #tpu.memory_space<vmem>>, vector<1x2x128xf32>,
    return
  }
  func.func @transform_0(%arg0: i32) -> (i32, i32) {
    %c0_i32 = arith.constant 0 : i32
    %c0_i32_0 = arith.constant 0 : i32
    return %arg0, %c0_i32 : i32, i32
  }
  func.func @transform_1(%arg0: i32) -> (i32, i32) {
    %c0_i32 = arith.constant 0 : i32
    %c0_i32_0 = arith.constant 0 : i32
    %c0_i32_1 = arith.constant 0 : i32
    return %c0_i32, %c0_i32_0 : i32, i32
  }
  func.func @transform_2(%arg0: i32) -> (i32, i32) {
    %c0_i32 = arith.constant 0 : i32
    %c0_i32_0 = arith.constant 0 : i32
    return %arg0, %c0_i32 : i32, i32
  }
  func.func @transform_3(%arg0: i32) -> (i32, i32, i32) {
    %c0_i32 = arith.constant 0 : i32
    %c0_i32_0 = arith.constant 0 : i32
    %c0_i32_1 = arith.constant 0 : i32
    return %arg0, %c0_i32, %c0_i32_0 : i32, i32, i32
  }
}

</mosaic_0001>

<llo_original>
// kernel: class_block_forward.2
$region0: #{class_block_forward.2}
  #allocation0 [shape = 'u32[]', space=smem, size = 0x4, offset = 0x4, fixed_abs, tag = 'smem constant byte address 0x4 - core index']
  #allocation1 [shape = 'u32[72,128]{1,0:T(1,128)}', space=vmem, size = 0x9000, scoped, tag = 'internal scratch']
  %s0 = inlined_call_operand.hbm [shape: f32[64,128], index: 0, kind: input, shape index: {}]
  %s1 = inlined_call_operand.hbm [shape: bf16[128,128], index: 1, kind: input, shape index: {}]
  %s2 = inlined_call_operand.vmem [shape: bf16[64,128], index: 2, kind: output, shape index: {0}]
  %s3 = inlined_call_operand.vmem [shape: f32[4,2,128], index: 3, kind: output, shape index: {1}]
  %4 = xla_tuple %s2, %s3
  %s5 = sld [smem:[#allocation0]]
  $region57: #{class_block_forward.2} parent=0
    _
  %s7 = ssub.s32 1, %s5
  %s8 = scalar_select 0, %s7, %s5
  $region1: #{class_block_forward.2} parent=0
    #allocation2 [shape = 'u8[16384]{0}', space=vmem, size = 0x4000, scoped, tag = 'input window, operand 0']
    #allocation3 [shape = 's32[2]{0}', space=sflag, size = 0x8, scoped, tag = 'scoped memory for class_block_forward.2']
    #allocation4 [shape = 'u8[32768]{0}', space=vmem, size = 0x8000, scoped, tag = 'input window, operand 1, single buffered']
    #allocation5 [shape = 's32[1]{0}', space=sflag, size = 0x4, scoped, tag = 'scoped memory for class_block_forward.2']
    %9 = vsyncpa [#allocation3], 0
    %s10 = scalar_lea.sflag [#allocation3], 1
    %11 = vsyncpa %s10, 0
    %12 = vsyncpa [#allocation5], 0
    loop: start=0, step=1, limit=6
    $region2: #{class_block_forward.2} parent=1 // loop_pre_header
      _
    $region3: #{class_block_forward.2} parent=1 // loop_header
      %s14 = sphi 0, %s18
      %p15 = scmp.ge.s32.totalorder %s14, 6
      %s24 = sphi 0, %s26
      %s27 = sphi 0, %s24
      %s28 = sphi 0, %s27
      %s44 = sphi 0, %s28
      %s48 = sphi 0, %s48
      %s50 = sphi 0, %s48
      %s51 = sphi 0, %s50
      %s65 = sphi 0, %s51
      %s71 = sphi 0, %s73
      %s74 = sphi 0, %s71
      %s75 = sphi 0, %s74
      %s91 = sphi 0, %s75
      %s97 = sphi 0, %s99
      %s100 = sphi 0, %s97
      %s101 = sphi 0, %s100
      %s117 = sphi 0, %s101
    $region4: #{class_block_forward.2} parent=1 // loop_header_branch
      %17 = sbr.rel (%p15) target = $region8
    $region5: #{class_block_forward.2} parent=1 // loop_body
      %s19 = ssub.s32 %s14, 1
      %s20 = ssub.s32 %s14, 2
      %s21 = sadd.s32 %s14, 1
      %s22 = ssub.s32 %s14, %s21
      %p23 = scmp.eq.s32.totalorder %s22, 0
      %s25 = sadd.s32 %s24, 1
      %s26 = scalar_select %p23, %s24, %s25
      %p29 = pneg %p23
      %p30 = scmp.eq.s32.totalorder %s14, 3
      %p31 = por %p29, %p30
      %p32 = scmp.ne.s32.totalorder %s24, %s27
      %p33 = scmp.eq.s32.totalorder %s14, 0
      %p34 = por %p32, %p33
      %p35 = scmp.ne.s32.totalorder %s24, %s27
      %p36 = scmp.eq.s32.totalorder %s19, 3
      %p37 = por %p35, %p36
      %p38 = scmp.ne.s32.totalorder %s27, %s28
      %p39 = scmp.eq.s32.totalorder %s19, 0
      %p40 = por %p38, %p39
      %p41 = scmp.ne.s32.totalorder %s27, %s28
      %p42 = scmp.eq.s32.totalorder %s20, 3
      %p43 = por %p41, %p42
      %p45 = scmp.ne.s32.totalorder %s28, %s44
      %p46 = scmp.eq.s32.totalorder %s20, 0
      %p47 = por %p45, %p46
      %s49 = sadd.s32 %s48, 1
      %p52 = scmp.eq.s32.totalorder %s14, 3
      %p53 = scmp.ne.s32.totalorder %s48, %s50
      %p54 = scmp.eq.s32.totalorder %s14, 0
      %p55 = por %p53, %p54
      %p56 = scmp.ne.s32.totalorder %s48, %s50
      %p57 = scmp.eq.s32.totalorder %s19, 3
      %p58 = por %p56, %p57
      %p59 = scmp.ne.s32.totalorder %s50, %s51
      %p60 = scmp.eq.s32.totalorder %s19, 0
      %p61 = por %p59, %p60
      %p62 = scmp.ne.s32.totalorder %s50, %s51
      %p63 = scmp.eq.s32.totalorder %s20, 3
      %p64 = por %p62, %p63
      %p66 = scmp.ne.s32.totalorder %s51, %s65
      %p67 = scmp.eq.s32.totalorder %s20, 0
      %p68 = por %p66, %p67
      %s69 = ssub.s32 %s14, %s21
      %p70 = scmp.eq.s32.totalorder %s69, 0
      %s72 = sadd.s32 %s71, 1
      %s73 = scalar_select %p70, %s71, %s72
      %p76 = pneg %p70
      %p77 = scmp.eq.s32.totalorder %s14, 3
      %p78 = por %p76, %p77
      %p79 = scmp.ne.s32.totalorder %s71, %s74
      %p80 = scmp.eq.s32.totalorder %s14, 0
      %p81 = por %p79, %p80
      %p82 = scmp.ne.s32.totalorder %s71, %s74
      %p83 = scmp.eq.s32.totalorder %s19, 3
      %p84 = por %p82, %p83
      %p85 = scmp.ne.s32.totalorder %s74, %s75
      %p86 = scmp.eq.s32.totalorder %s19, 0
      %p87 = por %p85, %p86
      %p88 = scmp.ne.s32.totalorder %s74, %s75
      %p89 = scmp.eq.s32.totalorder %s20, 3
      %p90 = por %p88, %p89
      %p92 = scmp.ne.s32.totalorder %s75, %s91
      %p93 = scmp.eq.s32.totalorder %s20, 0
      %p94 = por %p92, %p93
      %s95 = ssub.s32 %s14, %s21
      %p96 = scmp.eq.s32.totalorder %s95, 0
      %s98 = sadd.s32 %s97, 1
      %s99 = scalar_select %p96, %s97, %s98
      %p102 = pneg %p96
      %p103 = scmp.eq.s32.totalorder %s14, 3
      %p104 = por %p102, %p103
      %p105 = scmp.ne.s32.totalorder %s97, %s100
      %p106 = scmp.eq.s32.totalorder %s14, 0
      %p107 = por %p105, %p106
      %p108 = scmp.ne.s32.totalorder %s97, %s100
      %p109 = scmp.eq.s32.totalorder %s19, 3
      %p110 = por %p108, %p109
      %p111 = scmp.ne.s32.totalorder %s100, %s101
      %p112 = scmp.eq.s32.totalorder %s19, 0
      %p113 = por %p111, %p112
      %p114 = scmp.ne.s32.totalorder %s100, %s101
      %p115 = scmp.eq.s32.totalorder %s20, 3
      %p116 = por %p114, %p115
      %p118 = scmp.ne.s32.totalorder %s101, %s117
      %p119 = scmp.eq.s32.totalorder %s20, 0
      %p120 = por %p118, %p119
      %p121 = scmp.le.s32.totalorder 1, %s14
      %p122 = scmp.lt.s32.totalorder %s14, 5
      %p123 = pnand %p121, %p122
      %p124 = pneg %p123
      // Predicated region
      $region9: #{class_block_forward.2} parent=5 // pred_check
        _
      $region10: #{class_block_forward.2} parent=5 // pred_check_branch
        %126 = sbr.rel (%p123) target = $region12
      $region11: #{class_block_forward.2} parent=5 // pred_region
        %s127 = ssub.s32 %s14, 1
        // Predicated region
        $region13: #{class_block_forward.2} parent=11 // pred_check
          %p128 = pneg %p61
        $region14: #{class_block_forward.2} parent=11 // pred_check_branch
          %130 = sbr.rel (%p128) target = $region16
        $region15: #{class_block_forward.2} parent=11 // pred_region
          %132 = vsyncadd [#allocation5], 0
          %s133 = sshll.u32 %s1, 4
          %s134 = int_to_ptr.hbm [resolvable:$true] %s133
          %s135 = sshll.u32 [#allocation4], 4
          %s136 = int_to_ptr.vmem [resolvable:$true] %s135
          %141 = dma.hbm_to_vmem [thread:$0]  %s134, 1024, %s136, [#allocation5], 64, 64, 4
        $region16: #{class_block_forward.2} parent=11 // pred_fallthru
          _
      $region12: #{class_block_forward.2} parent=5 // pred_fallthru
        _
      %p142 = scmp.lt.s32.totalorder %s14, 4
      // Predicated region
      $region17: #{class_block_forward.2} parent=5 // pred_check
        %p143 = pneg %p142
      $region18: #{class_block_forward.2} parent=5 // pred_check_branch
        %145 = sbr.rel (%p143) target = $region20
      $region19: #{class_block_forward.2} parent=5 // pred_region
        // Predicated region
        $region21: #{class_block_forward.2} parent=19 // pred_check
          %p146 = pneg %p34
        $region22: #{class_block_forward.2} parent=19 // pred_check_branch
          %148 = sbr.rel (%p146) target = $region24
        $region23: #{class_block_forward.2} parent=19 // pred_region
          %s149 = sand.u32 %s24, 1
          %s150 = scalar_lea.sflag [#allocation3], %s149
          %s151 = sand.u32 %s24, 1
          %s152 = smul.addr %s151, 16
          %s153 = scalar_lea.vmem [#allocation2], %s152
          %s154 = smul.u32 2, %s14
          %156 = vsyncadd %s150, 0
          %s157 = smul.addr %s154, 8
          %s158 = scalar_lea.hbm %s0, %s157
          %s159 = sshll.u32 %s158, 4
          %s160 = int_to_ptr.hbm [resolvable:$true] %s159
          %s161 = sshll.u32 %s153, 4
          %s162 = int_to_ptr.vmem [resolvable:$true] %s161
          %167 = dma.hbm_to_vmem [thread:$0]  %s160, 256, %s162, %s150, 128, 128, 8
        $region24: #{class_block_forward.2} parent=19 // pred_fallthru
          _
      $region20: #{class_block_forward.2} parent=5 // pred_fallthru
        _
      %p168 = scmp.le.s32.totalorder 1, %s14
      %p169 = scmp.lt.s32.totalorder %s14, 5
      %p170 = pnand %p168, %p169
      %p171 = pneg %p170
      // Predicated region
      $region25: #{class_block_forward.2} parent=5 // pred_check
        _
      $region26: #{class_block_forward.2} parent=5 // pred_check_branch
        %173 = sbr.rel (%p170) target = $region28
      $region27: #{class_block_forward.2} parent=5 // pred_region
        %s174 = ssub.s32 %s14, 1
        %s175 = sand.u32 %s27, 1
        %s176 = scalar_lea.sflag [#allocation3], %s175
        %s177 = sand.u32 %s27, 1
        %s178 = smul.addr %s177, 16
        %s179 = scalar_lea.vmem [#allocation2], %s178
        // Predicated region
        $region29: #{class_block_forward.2} parent=27 // pred_check
          %p180 = pneg %p40
        $region30: #{class_block_forward.2} parent=27 // pred_check_branch
          %182 = sbr.rel (%p180) target = $region32
        $region31: #{class_block_forward.2} parent=27 // pred_region
          %184 = dma.done %s176, 256
        $region32: #{class_block_forward.2} parent=27 // pred_fallthru
          _
        // Predicated region
        $region33: #{class_block_forward.2} parent=27 // pred_check
          %p185 = pneg %p61
        $region34: #{class_block_forward.2} parent=27 // pred_check_branch
          %187 = sbr.rel (%p185) target = $region36
        $region35: #{class_block_forward.2} parent=27 // pred_region
          %189 = dma.done [#allocation5], 1024
        $region36: #{class_block_forward.2} parent=27 // pred_fallthru
          _
        %s190 = sand.u32 %s27, 1
        %s191 = scalar_lea.sflag [#allocation3], %s190
        %s192 = sand.u32 %s27, 1
        %s193 = smul.addr %s192, 16
        %s194 = scalar_lea.vmem [#allocation2], %s193
        %p195 = pneg %p40
        %p196 = pneg %p37
        %p197 = pneg %p61
        %p198 = pneg %p58
        %p199 = pneg %p87
        %p200 = pneg %p84
        %s201 = smul.u32 2, %s19
        %p202 = scmp.lt.s32.totalorder %s201, 7
        %s203 = scalar_select %p202, %s201, 7
        %s204 = smul.addr %s203, 4
        %s205 = scalar_lea.vmem %s2, %s204
        %p206 = pneg %p113
        %p207 = pneg %p110
        %p208 = scmp.lt.s32.totalorder %s19, 3
        %s209 = scalar_select %p208, %s19, 3
        %s210 = smul.addr %s209, 2
        %s211 = scalar_lea.vmem %s3, %s210
        %s212 = smul.u32 2, %s19
        %s213 = smul.u32 2, %s19
        %p214 = scmp.lt.s32.totalorder %s213, 7
        %s215 = scalar_select %p214, %s213, 7
        %s216 = smul.addr %s215, 4
        %s217 = scalar_lea.vmem %s2, %s216
        %s218 = smul.u32 2, %s19
        %p219 = scmp.lt.s32.totalorder %s19, 3
        %s220 = scalar_select %p219, %s19, 3
        %s221 = smul.addr %s220, 2
        %s222 = scalar_lea.vmem %s3, %s221
        %v223 = vld [vmem:[%s179] sm:$0xff]
        %v224 = vld [vmem:[%s179 + $0x8] sm:$0xff]
        %v225 = vpack.c.bf16 %v224, %v223
        %v226 = vld [vmem:[#allocation4] sm:$0xf]
        %v227 = vld [vmem:[#allocation4 + $0x4] sm:$0xf]
        %v228 = vld [vmem:[#allocation4 + $0x8] sm:$0xf]
        %v229 = vld [vmem:[#allocation4 + $0xc] sm:$0xf]
        %v230 = vld [vmem:[#allocation4 + $0x10] sm:$0xf]
        %v231 = vld [vmem:[#allocation4 + $0x14] sm:$0xf]
        %v232 = vld [vmem:[#allocation4 + $0x18] sm:$0xf]
        %v233 = vld [vmem:[#allocation4 + $0x1c] sm:$0xf]
        %v234 = vld [vmem:[#allocation4 + $0x20] sm:$0xf]
        %v235 = vld [vmem:[#allocation4 + $0x24] sm:$0xf]
        %v236 = vld [vmem:[#allocation4 + $0x28] sm:$0xf]
        %v237 = vld [vmem:[#allocation4 + $0x2c] sm:$0xf]
        %v238 = vld [vmem:[#allocation4 + $0x30] sm:$0xf]
        %v239 = vld [vmem:[#allocation4 + $0x34] sm:$0xf]
        %v240 = vld [vmem:[#allocation4 + $0x38] sm:$0xf]
        %v241 = vld [vmem:[#allocation4 + $0x3c] sm:$0xf]
        %v258 = vunpack.c.l.b16 %v226
        %v259 = vunpack.c.l.b16 %v227
        %v260 = vunpack.c.l.b16 %v228
        %v261 = vunpack.c.l.b16 %v229
        %v262 = vunpack.c.l.b16 %v230
        %v263 = vunpack.c.l.b16 %v231
        %v264 = vunpack.c.l.b16 %v232
        %v265 = vunpack.c.l.b16 %v233
        %v266 = vunpack.c.l.b16 %v234
        %v267 = vunpack.c.l.b16 %v235
        %v268 = vunpack.c.l.b16 %v236
        %v269 = vunpack.c.l.b16 %v237
        %v270 = vunpack.c.l.b16 %v238
        %v271 = vunpack.c.l.b16 %v239
        %v272 = vunpack.c.l.b16 %v240
        %v273 = vunpack.c.l.b16 %v241
        %v274 = vpack.c.b16 %v259, %v258
        %v275 = vpack.c.b16 %v261, %v260
        %v276 = vpack.c.b16 %v263, %v262
        %v277 = vpack.c.b16 %v265, %v264
        %v278 = vpack.c.b16 %v267, %v266
        %v279 = vpack.c.b16 %v269, %v268
        %v280 = vpack.c.b16 %v271, %v270
        %v281 = vpack.c.b16 %v273, %v272
        %290 = vmatpush.bf16.msra.mxu0 %v281
        %291 = vmatpush.bf16.msra.mxu0 %v280
        %292 = vmatpush.bf16.msra.mxu0 %v279
        %293 = vmatpush.bf16.msra.mxu0 %v278
        %294 = vmatpush.bf16.msra.mxu0 %v277
        %295 = vmatpush.bf16.msra.mxu0 %v276
        %296 = vmatpush.bf16.msra.mxu0 %v275
        %297 = vmatpush.bf16.msra.mxu0 %v274
        %298 = vmatmul.bf16.gmra.mxu0 %v225
        %v299 = vpop.f32.mrf.mxu0
        %v300 = vadd.f32 0.0, %v299
        %v301 = vpop.f32.mrf.mxu0
        %v302 = vadd.f32 0.0, %v301
        %303 = vdwg.mxu0
        %v304 = vpack.c.bf16 %v300, %v300
        %v305 = vpack.c.bf16 %v302, %v302
        %306 = vst [vmem:[%s217] sm:$0xf] %v304
        %307 = vst [vmem:[%s217 + $0x4] sm:$0xf] %v305
        %v308 = vadd.f32 %v300, %v302
        %v309 = vrot.slane %v308, 4
        %v310 = vadd.f32 %v308, %v309
        %v311 = vrot.slane %v310, 2
        %v312 = vadd.f32 %v310, %v311
        %v313 = vrot.slane %v312, 1
        %v314 = vadd.f32 %v312, %v313
        %v315 = vmul.f32 %v300, %v300
        %v316 = vmul.f32 %v302, %v302
        %v317 = vadd.f32 %v315, %v316
        %v318 = vrot.slane %v317, 4
        %v319 = vadd.f32 %v317, %v318
        %v320 = vrot.slane %v319, 2
        %v321 = vadd.f32 %v319, %v320
        %v322 = vrot.slane %v321, 1
        %v323 = vadd.f32 %v321, %v322
        %vm324 = vcmask 1040384
        %v325 = vsel %vm324, %v314, %v323
        %326 = vst [vmem:[%s222] sm:$0x3] %v325
        %s327 = smul.u32 2, %s19
        %p328 = scmp.lt.s32.totalorder %s327, 7
        %s329 = scalar_select %p328, %s327, 7
        %s330 = smul.addr %s329, 4
        %s331 = scalar_lea.vmem %s2, %s330
        %p332 = scmp.lt.s32.totalorder %s19, 3
        %s333 = scalar_select %p332, %s19, 3
        %s334 = smul.addr %s333, 2
        %s335 = scalar_lea.vmem %s3, %s334
        // Predicated region
        $region37: #{class_block_forward.2} parent=27 // pred_check
          %p336 = pneg %p84
        $region38: #{class_block_forward.2} parent=27 // pred_check_branch
          %338 = sbr.rel (%p336) target = $region40
        $region39: #{class_block_forward.2} parent=27 // pred_region
          %s339 = smul.u32 2, %s19
        $region40: #{class_block_forward.2} parent=27 // pred_fallthru
          _
        // Predicated region
        $region41: #{class_block_forward.2} parent=27 // pred_check
          %p340 = pneg %p110
        $region42: #{class_block_forward.2} parent=27 // pred_check_branch
          %342 = sbr.rel (%p340) target = $region44
        $region43: #{class_block_forward.2} parent=27 // pred_region
          _
        $region44: #{class_block_forward.2} parent=27 // pred_fallthru
          _
      $region28: #{class_block_forward.2} parent=5 // pred_fallthru
        _
      %p343 = scmp.le.s32.totalorder 2, %s14
      // Predicated region
      $region45: #{class_block_forward.2} parent=5 // pred_check
        %p344 = pneg %p343
      $region46: #{class_block_forward.2} parent=5 // pred_check_branch
        %346 = sbr.rel (%p344) target = $region48
      $region47: #{class_block_forward.2} parent=5 // pred_region
        %s347 = ssub.s32 %s14, 2
        // Predicated region
        $region49: #{class_block_forward.2} parent=47 // pred_check
          %p348 = pneg %p90
        $region50: #{class_block_forward.2} parent=47 // pred_check_branch
          %350 = sbr.rel (%p348) target = $region52
        $region51: #{class_block_forward.2} parent=47 // pred_region
          %s351 = smul.u32 2, %s20
          %p352 = scmp.lt.s32.totalorder %s351, 7
          %s353 = scalar_select %p352, %s351, 7
          %s354 = smul.addr %s353, 4
          %s355 = scalar_lea.vmem %s2, %s354
        $region52: #{class_block_forward.2} parent=47 // pred_fallthru
          _
        // Predicated region
        $region53: #{class_block_forward.2} parent=47 // pred_check
          %p356 = pneg %p116
        $region54: #{class_block_forward.2} parent=47 // pred_check_branch
          %358 = sbr.rel (%p356) target = $region56
        $region55: #{class_block_forward.2} parent=47 // pred_region
          %p359 = scmp.lt.s32.totalorder %s20, 3
          %s360 = scalar_select %p359, %s20, 3
          %s361 = smul.addr %s360, 2
          %s362 = scalar_lea.vmem %s3, %s361
        $region56: #{class_block_forward.2} parent=47 // pred_fallthru
          _
      $region48: #{class_block_forward.2} parent=5 // pred_fallthru
        _
    $region6: #{class_block_forward.2} parent=1 // loop_footer
      %s18 = sadd.s32 1, %s14
    $region7: #{class_block_forward.2} parent=1 // loop_footer_branch
      %13 = sbr.rel target = $region3
    $region8: #{class_block_forward.2} parent=1 // loop_exit
      _
    %363 = vsyncpa [#allocation3], 1
    %s364 = scalar_lea.sflag [#allocation3], 1
    %365 = vsyncpa %s364, 1
    %366 = vsyncpa [#allocation5], 1

// kernel: class_block_forward.3
$region0: #{class_block_forward.3}
  #allocation0 [shape = 'u32[]', space=smem, size = 0x4, offset = 0x4, fixed_abs, tag = 'smem constant byte address 0x4 - core index']
  #allocation1 [shape = 'u32[72,128]{1,0:T(1,128)}', space=vmem, size = 0x9000, scoped, tag = 'internal scratch']
  %s0 = inlined_call_operand.vmem [shape: bf16[64,128], index: 0, kind: input, shape index: {}]
  %s1 = inlined_call_operand.vmem [shape: f32[1,128], index: 1, kind: input, shape index: {}]
  %s2 = inlined_call_operand.vmem [shape: f32[1,128], index: 2, kind: input, shape index: {}]
  %s3 = inlined_call_operand.hbm [shape: bf16[128,128], index: 3, kind: input, shape index: {}]
  %s4 = inlined_call_operand.vmem [shape: f32[1,128], index: 4, kind: input, shape index: {}]
  %s5 = inlined_call_operand.vmem [shape: f32[64,128], index: 5, kind: output, shape index: {}]
  %s6 = sld [smem:[#allocation0]]
  $region57: #{class_block_forward.3} parent=0
    _
  %s8 = ssub.s32 1, %s6
  %s9 = scalar_select 0, %s8, %s6
  $region1: #{class_block_forward.3} parent=0
    #allocation2 [shape = 'u8[32768]{0}', space=vmem, size = 0x8000, scoped, tag = 'input window, operand 3, single buffered']
    #allocation3 [shape = 's32[2]{0}', space=sflag, size = 0x8, scoped, tag = 'scoped memory for class_block_forward.3']
    %10 = vsyncpa [#allocation3], 0
    loop: start=0, step=1, limit=6
    $region2: #{class_block_forward.3} parent=1 // loop_pre_header
      _
    $region3: #{class_block_forward.3} parent=1 // loop_header
      %s12 = sphi 0, %s16
      %p13 = scmp.ge.s32.totalorder %s12, 6
      %s22 = sphi 0, %s24
      %s25 = sphi 0, %s22
      %s26 = sphi 0, %s25
      %s42 = sphi 0, %s26
      %s46 = sphi 0, %s46
      %s48 = sphi 0, %s46
      %s49 = sphi 0, %s48
      %s63 = sphi 0, %s49
      %s67 = sphi 0, %s67
      %s69 = sphi 0, %s67
      %s70 = sphi 0, %s69
      %s84 = sphi 0, %s70
      %s88 = sphi 0, %s88
      %s90 = sphi 0, %s88
      %s91 = sphi 0, %s90
      %s105 = sphi 0, %s91
      %s109 = sphi 0, %s109
      %s111 = sphi 0, %s109
      %s112 = sphi 0, %s111
      %s126 = sphi 0, %s112
      %s132 = sphi 0, %s134
      %s135 = sphi 0, %s132
      %s136 = sphi 0, %s135
      %s152 = sphi 0, %s136
    $region4: #{class_block_forward.3} parent=1 // loop_header_branch
      %15 = sbr.rel (%p13) target = $region8
    $region5: #{class_block_forward.3} parent=1 // loop_body
      %s17 = ssub.s32 %s12, 1
      %s18 = ssub.s32 %s12, 2
      %s19 = sadd.s32 %s12, 1
      %s20 = ssub.s32 %s12, %s19
      %p21 = scmp.eq.s32.totalorder %s20, 0
      %s23 = sadd.s32 %s22, 1
      %s24 = scalar_select %p21, %s22, %s23
      %p27 = pneg %p21
      %p28 = scmp.eq.s32.totalorder %s12, 3
      %p29 = por %p27, %p28
      %p30 = scmp.ne.s32.totalorder %s22, %s25
      %p31 = scmp.eq.s32.totalorder %s12, 0
      %p32 = por %p30, %p31
      %p33 = scmp.ne.s32.totalorder %s22, %s25
      %p34 = scmp.eq.s32.totalorder %s17, 3
      %p35 = por %p33, %p34
      %p36 = scmp.ne.s32.totalorder %s25, %s26
      %p37 = scmp.eq.s32.totalorder %s17, 0
      %p38 = por %p36, %p37
      %p39 = scmp.ne.s32.totalorder %s25, %s26
      %p40 = scmp.eq.s32.totalorder %s18, 3
      %p41 = por %p39, %p40
      %p43 = scmp.ne.s32.totalorder %s26, %s42
      %p44 = scmp.eq.s32.totalorder %s18, 0
      %p45 = por %p43, %p44
      %s47 = sadd.s32 %s46, 1
      %p50 = scmp.eq.s32.totalorder %s12, 3
      %p51 = scmp.ne.s32.totalorder %s46, %s48
      %p52 = scmp.eq.s32.totalorder %s12, 0
      %p53 = por %p51, %p52
      %p54 = scmp.ne.s32.totalorder %s46, %s48
      %p55 = scmp.eq.s32.totalorder %s17, 3
      %p56 = por %p54, %p55
      %p57 = scmp.ne.s32.totalorder %s48, %s49
      %p58 = scmp.eq.s32.totalorder %s17, 0
      %p59 = por %p57, %p58
      %p60 = scmp.ne.s32.totalorder %s48, %s49
      %p61 = scmp.eq.s32.totalorder %s18, 3
      %p62 = por %p60, %p61
      %p64 = scmp.ne.s32.totalorder %s49, %s63
      %p65 = scmp.eq.s32.totalorder %s18, 0
      %p66 = por %p64, %p65
      %s68 = sadd.s32 %s67, 1
      %p71 = scmp.eq.s32.totalorder %s12, 3
      %p72 = scmp.ne.s32.totalorder %s67, %s69
      %p73 = scmp.eq.s32.totalorder %s12, 0
      %p74 = por %p72, %p73
      %p75 = scmp.ne.s32.totalorder %s67, %s69
      %p76 = scmp.eq.s32.totalorder %s17, 3
      %p77 = por %p75, %p76
      %p78 = scmp.ne.s32.totalorder %s69, %s70
      %p79 = scmp.eq.s32.totalorder %s17, 0
      %p80 = por %p78, %p79
      %p81 = scmp.ne.s32.totalorder %s69, %s70
      %p82 = scmp.eq.s32.totalorder %s18, 3
      %p83 = por %p81, %p82
      %p85 = scmp.ne.s32.totalorder %s70, %s84
      %p86 = scmp.eq.s32.totalorder %s18, 0
      %p87 = por %p85, %p86
      %s89 = sadd.s32 %s88, 1
      %p92 = scmp.eq.s32.totalorder %s12, 3
      %p93 = scmp.ne.s32.totalorder %s88, %s90
      %p94 = scmp.eq.s32.totalorder %s12, 0
      %p95 = por %p93, %p94
      %p96 = scmp.ne.s32.totalorder %s88, %s90
      %p97 = scmp.eq.s32.totalorder %s17, 3
      %p98 = por %p96, %p97
      %p99 = scmp.ne.s32.totalorder %s90, %s91
      %p100 = scmp.eq.s32.totalorder %s17, 0
      %p101 = por %p99, %p100
      %p102 = scmp.ne.s32.totalorder %s90, %s91
      %p103 = scmp.eq.s32.totalorder %s18, 3
      %p104 = por %p102, %p103
      %p106 = scmp.ne.s32.totalorder %s91, %s105
      %p107 = scmp.eq.s32.totalorder %s18, 0
      %p108 = por %p106, %p107
      %s110 = sadd.s32 %s109, 1
      %p113 = scmp.eq.s32.totalorder %s12, 3
      %p114 = scmp.ne.s32.totalorder %s109, %s111
      %p115 = scmp.eq.s32.totalorder %s12, 0
      %p116 = por %p114, %p115
      %p117 = scmp.ne.s32.totalorder %s109, %s111
      %p118 = scmp.eq.s32.totalorder %s17, 3
      %p119 = por %p117, %p118
      %p120 = scmp.ne.s32.totalorder %s111, %s112
      %p121 = scmp.eq.s32.totalorder %s17, 0
      %p122 = por %p120, %p121
      %p123 = scmp.ne.s32.totalorder %s111, %s112
      %p124 = scmp.eq.s32.totalorder %s18, 3
      %p125 = por %p123, %p124
      %p127 = scmp.ne.s32.totalorder %s112, %s126
      %p128 = scmp.eq.s32.totalorder %s18, 0
      %p129 = por %p127, %p128
      %s130 = ssub.s32 %s12, %s19
      %p131 = scmp.eq.s32.totalorder %s130, 0
      %s133 = sadd.s32 %s132, 1
      %s134 = scalar_select %p131, %s132, %s133
      %p137 = pneg %p131
      %p138 = scmp.eq.s32.totalorder %s12, 3
      %p139 = por %p137, %p138
      %p140 = scmp.ne.s32.totalorder %s132, %s135
      %p141 = scmp.eq.s32.totalorder %s12, 0
      %p142 = por %p140, %p141
      %p143 = scmp.ne.s32.totalorder %s132, %s135
      %p144 = scmp.eq.s32.totalorder %s17, 3
      %p145 = por %p143, %p144
      %p146 = scmp.ne.s32.totalorder %s135, %s136
      %p147 = scmp.eq.s32.totalorder %s17, 0
      %p148 = por %p146, %p147
      %p149 = scmp.ne.s32.totalorder %s135, %s136
      %p150 = scmp.eq.s32.totalorder %s18, 3
      %p151 = por %p149, %p150
      %p153 = scmp.ne.s32.totalorder %s136, %s152
      %p154 = scmp.eq.s32.totalorder %s18, 0
      %p155 = por %p153, %p154
      %p156 = scmp.le.s32.totalorder 1, %s12
      %p157 = scmp.lt.s32.totalorder %s12, 5
      %p158 = pnand %p156, %p157
      %p159 = pneg %p158
      // Predicated region
      $region9: #{class_block_forward.3} parent=5 // pred_check
        _
      $region10: #{class_block_forward.3} parent=5 // pred_check_branch
        %161 = sbr.rel (%p158) target = $region12
      $region11: #{class_block_forward.3} parent=5 // pred_region
        %s162 = ssub.s32 %s12, 1
        // Predicated region
        $region13: #{class_block_forward.3} parent=11 // pred_check
          %p163 = pneg %p59
        $region14: #{class_block_forward.3} parent=11 // pred_check_branch
          %165 = sbr.rel (%p163) target = $region16
        $region15: #{class_block_forward.3} parent=11 // pred_region
          _
        $region16: #{class_block_forward.3} parent=11 // pred_fallthru
          _
        // Predicated region
        $region17: #{class_block_forward.3} parent=11 // pred_check
          %p166 = pneg %p80
        $region18: #{class_block_forward.3} parent=11 // pred_check_branch
          %168 = sbr.rel (%p166) target = $region20
        $region19: #{class_block_forward.3} parent=11 // pred_region
          _
        $region20: #{class_block_forward.3} parent=11 // pred_fallthru
          _
        // Predicated region
        $region21: #{class_block_forward.3} parent=11 // pred_check
          %p169 = pneg %p101
        $region22: #{class_block_forward.3} parent=11 // pred_check_branch
          %171 = sbr.rel (%p169) target = $region24
        $region23: #{class_block_forward.3} parent=11 // pred_region
          %173 = vsyncadd [#allocation3], 0
          %s174 = sshll.u32 %s3, 4
          %s175 = int_to_ptr.hbm [resolvable:$true] %s174
          %s176 = sshll.u32 [#allocation2], 4
          %s177 = int_to_ptr.vmem [resolvable:$true] %s176
          %182 = dma.hbm_to_vmem [thread:$0]  %s175, 1024, %s177, [#allocation3], 64, 64, 4
        $region24: #{class_block_forward.3} parent=11 // pred_fallthru
          _
        // Predicated region
        $region25: #{class_block_forward.3} parent=11 // pred_check
          %p183 = pneg %p122
        $region26: #{class_block_forward.3} parent=11 // pred_check_branch
          %185 = sbr.rel (%p183) target = $region28
        $region27: #{class_block_forward.3} parent=11 // pred_region
          _
        $region28: #{class_block_forward.3} parent=11 // pred_fallthru
          _
      $region12: #{class_block_forward.3} parent=5 // pred_fallthru
        _
      %p186 = scmp.lt.s32.totalorder %s12, 4
      // Predicated region
      $region29: #{class_block_forward.3} parent=5 // pred_check
        %p187 = pneg %p186
      $region30: #{class_block_forward.3} parent=5 // pred_check_branch
        %189 = sbr.rel (%p187) target = $region32
      $region31: #{class_block_forward.3} parent=5 // pred_region
        // Predicated region
        $region33: #{class_block_forward.3} parent=31 // pred_check
          %p190 = pneg %p32
        $region34: #{class_block_forward.3} parent=31 // pred_check_branch
          %192 = sbr.rel (%p190) target = $region36
        $region35: #{class_block_forward.3} parent=31 // pred_region
          %s193 = smul.u32 2, %s12
          %p194 = scmp.lt.s32.totalorder %s193, 7
          %s195 = scalar_select %p194, %s193, 7
          %s196 = smul.addr %s195, 4
          %s197 = scalar_lea.vmem %s0, %s196
          %s198 = smul.u32 2, %s12
        $region36: #{class_block_forward.3} parent=31 // pred_fallthru
          _
      $region32: #{class_block_forward.3} parent=5 // pred_fallthru
        _
      %p199 = scmp.le.s32.totalorder 1, %s12
      %p200 = scmp.lt.s32.totalorder %s12, 5
      %p201 = pnand %p199, %p200
      %p202 = pneg %p201
      // Predicated region
      $region37: #{class_block_forward.3} parent=5 // pred_check
        _
      $region38: #{class_block_forward.3} parent=5 // pred_check_branch
        %204 = sbr.rel (%p201) target = $region40
      $region39: #{class_block_forward.3} parent=5 // pred_region
        %s205 = ssub.s32 %s12, 1
        // Predicated region
        $region41: #{class_block_forward.3} parent=39 // pred_check
          %p206 = pneg %p101
        $region42: #{class_block_forward.3} parent=39 // pred_check_branch
          %208 = sbr.rel (%p206) target = $region44
        $region43: #{class_block_forward.3} parent=39 // pred_region
          %210 = dma.done [#allocation3], 1024
        $region44: #{class_block_forward.3} parent=39 // pred_fallthru
          _
        %s211 = smul.u32 2, %s17
        %p212 = scmp.lt.s32.totalorder %s211, 7
        %s213 = scalar_select %p212, %s211, 7
        %s214 = smul.addr %s213, 4
        %s215 = scalar_lea.vmem %s0, %s214
        %p216 = pneg %p38
        %p217 = pneg %p35
        %p218 = pneg %p59
        %p219 = pneg %p56
        %p220 = pneg %p80
        %p221 = pneg %p77
        %p222 = pneg %p101
        %p223 = pneg %p98
        %p224 = pneg %p122
        %p225 = pneg %p119
        %p226 = pneg %p148
        %p227 = pneg %p145
        %s228 = smul.u32 2, %s17
        %p229 = scmp.lt.s32.totalorder %s228, 7
        %s230 = scalar_select %p229, %s228, 7
        %s231 = smul.addr %s230, 8
        %s232 = scalar_lea.vmem %s5, %s231
        %s233 = smul.u32 2, %s17
        %p234 = scmp.lt.s32.totalorder %s233, 7
        %s235 = scalar_select %p234, %s233, 7
        %s236 = smul.addr %s235, 4
        %s237 = scalar_lea.vmem %s0, %s236
        %s238 = smul.u32 2, %s17
        %s239 = smul.u32 2, %s17
        %p240 = scmp.lt.s32.totalorder %s239, 7
        %s241 = scalar_select %p240, %s239, 7
        %s242 = smul.addr %s241, 8
        %s243 = scalar_lea.vmem %s5, %s242
        %s244 = smul.u32 2, %s17
        %v245 = vld [vmem:[%s237] sm:$0xf]
        %v246 = vld [vmem:[%s237 + $0x4] sm:$0xf]
        %v247 = vunpack.c.l.bf16 %v245
        %v248 = vunpack.c.l.bf16 %v246
        %v249 = vld [vmem:[%s1] sm:$0x1]
        %v251 = vperm.slane %v249, 0
        %v253 = vmul.f32 %v247, %v251
        %v254 = vmul.f32 %v248, %v251
        %v255 = vld [vmem:[%s2] sm:$0x1]
        %v257 = vperm.slane %v255, 0
        %v259 = vadd.f32 %v253, %v257
        %v260 = vadd.f32 %v254, %v257
        %v261 = vpack.c.bf16 %v260, %v259
        %v262 = vld [vmem:[#allocation2] sm:$0xf]
        %v263 = vld [vmem:[#allocation2 + $0x4] sm:$0xf]
        %v264 = vld [vmem:[#allocation2 + $0x8] sm:$0xf]
        %v265 = vld [vmem:[#allocation2 + $0xc] sm:$0xf]
        %v266 = vld [vmem:[#allocation2 + $0x10] sm:$0xf]
        %v267 = vld [vmem:[#allocation2 + $0x14] sm:$0xf]
        %v268 = vld [vmem:[#allocation2 + $0x18] sm:$0xf]
        %v269 = vld [vmem:[#allocation2 + $0x1c] sm:$0xf]
        %v270 = vld [vmem:[#allocation2 + $0x20] sm:$0xf]
        %v271 = vld [vmem:[#allocation2 + $0x24] sm:$0xf]
        %v272 = vld [vmem:[#allocation2 + $0x28] sm:$0xf]
        %v273 = vld [vmem:[#allocation2 + $0x2c] sm:$0xf]
        %v274 = vld [vmem:[#allocation2 + $0x30] sm:$0xf]
        %v275 = vld [vmem:[#allocation2 + $0x34] sm:$0xf]
        %v276 = vld [vmem:[#allocation2 + $0x38] sm:$0xf]
        %v277 = vld [vmem:[#allocation2 + $0x3c] sm:$0xf]
        %v278 = vld [vmem:[%s4] sm:$0x1]
        %v280 = vperm.slane %v278, 0
        %v298 = vunpack.c.l.b16 %v262
        %v299 = vunpack.c.l.b16 %v263
        %v300 = vunpack.c.l.b16 %v264
        %v301 = vunpack.c.l.b16 %v265
        %v302 = vunpack.c.l.b16 %v266
        %v303 = vunpack.c.l.b16 %v267
        %v304 = vunpack.c.l.b16 %v268
        %v305 = vunpack.c.l.b16 %v269
        %v306 = vunpack.c.l.b16 %v270
        %v307 = vunpack.c.l.b16 %v271
        %v308 = vunpack.c.l.b16 %v272
        %v309 = vunpack.c.l.b16 %v273
        %v310 = vunpack.c.l.b16 %v274
        %v311 = vunpack.c.l.b16 %v275
        %v312 = vunpack.c.l.b16 %v276
        %v313 = vunpack.c.l.b16 %v277
        %v314 = vpack.c.b16 %v299, %v298
        %v315 = vpack.c.b16 %v301, %v300
        %v316 = vpack.c.b16 %v303, %v302
        %v317 = vpack.c.b16 %v305, %v304
        %v318 = vpack.c.b16 %v307, %v306
        %v319 = vpack.c.b16 %v309, %v308
        %v320 = vpack.c.b16 %v311, %v310
        %v321 = vpack.c.b16 %v313, %v312
        %330 = vmatpush.bf16.msra.mxu0 %v321
        %331 = vmatpush.bf16.msra.mxu0 %v320
        %332 = vmatpush.bf16.msra.mxu0 %v319
        %333 = vmatpush.bf16.msra.mxu0 %v318
        %334 = vmatpush.bf16.msra.mxu0 %v317
        %335 = vmatpush.bf16.msra.mxu0 %v316
        %336 = vmatpush.bf16.msra.mxu0 %v315
        %337 = vmatpush.bf16.msra.mxu0 %v314
        %338 = vmatmul.bf16.gmra.mxu0 %v261
        %v339 = vpop.f32.mrf.mxu0
        %v340 = vadd.f32 %v280, %v339
        %v341 = vpop.f32.mrf.mxu0
        %v342 = vadd.f32 %v280, %v341
        %343 = vdwg.mxu0
        %344 = vst [vmem:[%s243] sm:$0xff] %v340
        %345 = vst [vmem:[%s243 + $0x8] sm:$0xff] %v342
        %s346 = smul.u32 2, %s17
        %p347 = scmp.lt.s32.totalorder %s346, 7
        %s348 = scalar_select %p347, %s346, 7
        %s349 = smul.addr %s348, 8
        %s350 = scalar_lea.vmem %s5, %s349
        // Predicated region
        $region45: #{class_block_forward.3} parent=39 // pred_check
          %p351 = pneg %p145
        $region46: #{class_block_forward.3} parent=39 // pred_check_branch
          %353 = sbr.rel (%p351) target = $region48
        $region47: #{class_block_forward.3} parent=39 // pred_region
          %s354 = smul.u32 2, %s17
        $region48: #{class_block_forward.3} parent=39 // pred_fallthru
          _
      $region40: #{class_block_forward.3} parent=5 // pred_fallthru
        _
      %p355 = scmp.le.s32.totalorder 2, %s12
      // Predicated region
      $region49: #{class_block_forward.3} parent=5 // pred_check
        %p356 = pneg %p355
      $region50: #{class_block_forward.3} parent=5 // pred_check_branch
        %358 = sbr.rel (%p356) target = $region52
      $region51: #{class_block_forward.3} parent=5 // pred_region
        %s359 = ssub.s32 %s12, 2
        // Predicated region
        $region53: #{class_block_forward.3} parent=51 // pred_check
          %p360 = pneg %p151
        $region54: #{class_block_forward.3} parent=51 // pred_check_branch
          %362 = sbr.rel (%p360) target = $region56
        $region55: #{class_block_forward.3} parent=51 // pred_region
          %s363 = smul.u32 2, %s18
          %p364 = scmp.lt.s32.totalorder %s363, 7
          %s365 = scalar_select %p364, %s363, 7
          %s366 = smul.addr %s365, 8
          %s367 = scalar_lea.vmem %s5, %s366
        $region56: #{class_block_forward.3} parent=51 // pred_fallthru
          _
      $region52: #{class_block_forward.3} parent=5 // pred_fallthru
        _
    $region6: #{class_block_forward.3} parent=1 // loop_footer
      %s16 = sadd.s32 1, %s12
    $region7: #{class_block_forward.3} parent=1 // loop_footer_branch
      %11 = sbr.rel target = $region3
    $region8: #{class_block_forward.3} parent=1 // loop_exit
      _
    %368 = vsyncpa [#allocation3], 1
    %s369 = scalar_lea.sflag [#allocation3], 1
    %370 = vsyncpa %s369, 1

</llo_original>
